<compile_context>
chip_gen: v6e
topology: v6e:2x2x1
jax: 0.10.0
libtpu: 0.0.40
codegen_flags: <defaults>
</compile_context>

<pallas_src>
import jax
import jax.numpy as jnp
from jax.experimental import pallas as pl
from jax.experimental.pallas import tpu as pltpu


def _rope_kernel(c_ref, s_ref, q_ref, k_ref, qo_ref, ko_ref):
    c = c_ref[...][None, :, :]          # (1, T_S, D/2)
    s = s_ref[...][None, :, :]          # (1, T_S, D/2)
    half = c.shape[-1]

    q = q_ref[...]                      # (T_BH, T_S, D)
    k = k_ref[...]                      # (T_BH, T_S, D)

    q1, q2 = q[..., :half], q[..., half:]
    k1, k2 = k[..., :half], k[..., half:]

    # out = x * cos + rotate_half(x) * sin, with rotate_half([x1,x2]) = [-x2,x1]
    qo_ref[...] = jnp.concatenate(
        [q1 * c - q2 * s, q2 * c + q1 * s], axis=-1).astype(qo_ref.dtype)
    ko_ref[...] = jnp.concatenate(
        [k1 * c - k2 * s, k2 * c + k1 * s], axis=-1).astype(ko_ref.dtype)


def _largest_divisor(n, cap, multiple=1):
    """Largest divisor of n that is <= cap and a multiple of `multiple`."""
    cap = max(1, min(n, cap))
    for t in range(cap, 0, -1):
        if n % t == 0 and t % multiple == 0:
            return t
    return None


def rotary_embedding(query, key, base: float = 10000.0):
    """Apply rotary position embedding to query and key.

    query, key: [B, H, S, D] float arrays (same shape).
    Returns (q_rot, k_rot) with the same shape/dtype.
    """
    B, H, S, D = query.shape
    assert key.shape == query.shape
    assert D % 2 == 0
    dtype = query.dtype

    # --- Precompute HALF-width cos/sin tables (glue, plain JAX). -------------
    inv_freq = 1.0 / (base ** (jnp.arange(0, D, 2, dtype=jnp.float32) / D))  # (D/2,)
    pos = jnp.arange(S, dtype=jnp.float32)                                   # (S,)
    freqs = pos[:, None] * inv_freq[None, :]                                 # (S, D/2)
    table_dtype = jnp.bfloat16 if dtype == jnp.bfloat16 else jnp.float32
    cos_h = jnp.cos(freqs).astype(table_dtype)                               # (S, D/2)
    sin_h = jnp.sin(freqs).astype(table_dtype)                               # (S, D/2)

    BH = B * H
    q_flat = query.reshape(BH, S, D)
    k_flat = key.reshape(BH, S, D)

    # --- Tile sizing: ~2 MiB per q/k/qo/ko block (fits 32 MiB scoped VMEM). --
    itemsize = jnp.dtype(dtype).itemsize
    target_block_bytes = 2 * 1024 * 1024
    sub = 16 if itemsize == 2 else 8          # sublane granularity
    row_bytes = D * itemsize
    max_ts = max(1, target_block_bytes // row_bytes)
    t_s = _largest_divisor(S, max_ts, multiple=sub) or S
    max_tbh = max(1, target_block_bytes // (t_s * row_bytes))
    t_bh = _largest_divisor(BH, max_tbh, multiple=1) or BH

    grid = (BH // t_bh, S // t_s)

    qk_spec = pl.BlockSpec((t_bh, t_s, D), lambda i, j: (i, j, 0))
    cs_spec = pl.BlockSpec((t_s, D // 2), lambda i, j: (j, 0))

    q_out, k_out = pl.pallas_call(
        _rope_kernel,
        out_shape=(
            jax.ShapeDtypeStruct((BH, S, D), dtype),
            jax.ShapeDtypeStruct((BH, S, D), dtype),
        ),
        grid_spec=pltpu.PrefetchScalarGridSpec(
            num_scalar_prefetch=0,
            grid=grid,
            in_specs=[cs_spec, cs_spec, qk_spec, qk_spec],
            out_specs=(qk_spec, qk_spec),
        ),
        compiler_params=pltpu.CompilerParams(
            dimension_semantics=("parallel", "parallel"),
        ),
    )(cos_h, sin_h, q_flat, k_flat)

    return q_out.reshape(B, H, S, D), k_out.reshape(B, H, S, D)


def _rope_reference(query, key, base: float = 10000.0):
    B, H, S, D = query.shape
    inv_freq = 1.0 / (base ** (jnp.arange(0, D, 2, dtype=jnp.float32) / D))
    pos = jnp.arange(S, dtype=jnp.float32)
    freqs = jnp.einsum("s,d->sd", pos, inv_freq)
    emb = jnp.concatenate([freqs, freqs], axis=-1)
    cos = jnp.cos(emb)[None, None, :, :]
    sin = jnp.sin(emb)[None, None, :, :]

    def rot_half(x):
        x1, x2 = jnp.split(x, 2, axis=-1)
        return jnp.concatenate([-x2, x1], axis=-1)

    q = query * cos + rot_half(query) * sin
    k = key * cos + rot_half(key) * sin
    return q.astype(query.dtype), k.astype(key.dtype)


if __name__ == "__main__":
    B, H, S, D = 2, 4, 8, 32
    key0 = jax.random.PRNGKey(0)
    kq, kk = jax.random.split(key0)
    query = jax.random.normal(kq, (B, H, S, D), dtype=jnp.float32)
    key_ = jax.random.normal(kk, (B, H, S, D), dtype=jnp.float32)

    q_out, k_out = rotary_embedding(query, key_)
    jax.block_until_ready((q_out, k_out))

    q_ref, k_ref = _rope_reference(query, key_)
    assert jnp.allclose(q_out, q_ref, atol=1e-5, rtol=1e-5)
    assert jnp.allclose(k_out, k_ref, atol=1e-5, rtol=1e-5)

    print("KERNEL_OK")
</pallas_src>

<mosaic_0001>
module attributes {stable_mosaic.version = 11 : i64} {
  func.func @_rope_kernel(%arg0: i32, %arg1: i32, %arg2: memref<8x16xf32, #tpu.memory_space<vmem>>, %arg3: memref<8x16xf32, #tpu.memory_space<vmem>>, %arg4: memref<8x8x32xf32, #tpu.memory_space<vmem>>, %arg5: memref<8x8x32xf32, #tpu.memory_space<vmem>>, %arg6: memref<8x8x32xf32, #tpu.memory_space<vmem>>, %arg7: memref<8x8x32xf32, #tpu.memory_space<vmem>>) attributes {dimension_semantics = [#tpu.dimension_semantics<parallel>, #tpu.dimension_semantics<parallel>], iteration_bounds = array<i64: 1, 1>, scalar_prefetch = 0 : i64, scratch_operands = 0 : i64, tpu.core_type = #tpu.core_type<tc>, window_params = [{transform_indices = @transform_0, window_bounds = array<i64: 8, 16>}, {transform_indices = @transform_1, window_bounds = array<i64: 8, 16>}, {transform_indices = @transform_2, window_bounds = array<i64: 8, 8, 32>}, {transform_indices = @transform_3, window_bounds = array<i64: 8, 8, 32>}, {transform_indices = @transform_4, window_bounds = array<i64: 8, 8, 32>}, {transform_indices = @transform_5, window_bounds = array<i64: 8, 8, 32>}]} {
    %c0 = arith.constant 0 : index
    %c0_0 = arith.constant 0 : index
    %0 = vector.load %arg2[%c0, %c0_0] : memref<8x16xf32, #tpu.memory_space<vmem>>, vector<8x16xf32>
    %1 = vector.shape_cast %0 : vector<8x16xf32> to vector<1x8x16xf32>
    %c0_1 = arith.constant 0 : index
    %c0_2 = arith.constant 0 : index
    %2 = vector.load %arg3[%c0_1, %c0_2] : memref<8x16xf32, #tpu.memory_space<vmem>>, vector<8x16xf32>
    %3 = vector.shape_cast %2 : vector<8x16xf32> to vector<1x8x16xf32>
    %c0_3 = arith.constant 0 : index
    %c0_4 = arith.constant 0 : index
    %c0_5 = arith.constant 0 : index
    %4 = vector.load %arg4[%c0_3, %c0_4, %c0_5] : memref<8x8x32xf32, #tpu.memory_space<vmem>>, vector<8x8x32xf32>
    %c0_6 = arith.constant 0 : index
    %c0_7 = arith.constant 0 : index
    %c0_8 = arith.constant 0 : index
    %5 = vector.load %arg5[%c0_6, %c0_7, %c0_8] : memref<8x8x32xf32, #tpu.memory_space<vmem>>, vector<8x8x32xf32>
    %6 = vector.extract_strided_slice %4 {offsets = [0, 0, 0], sizes = [8, 8, 16], strides = [1, 1, 1]} : vector<8x8x32xf32> to vector<8x8x16xf32>
    %7 = vector.extract_strided_slice %4 {offsets = [0, 0, 16], sizes = [8, 8, 16], strides = [1, 1, 1]} : vector<8x8x32xf32> to vector<8x8x16xf32>
    %8 = vector.extract_strided_slice %5 {offsets = [0, 0, 0], sizes = [8, 8, 16], strides = [1, 1, 1]} : vector<8x8x32xf32> to vector<8x8x16xf32>
    %9 = vector.extract_strided_slice %5 {offsets = [0, 0, 16], sizes = [8, 8, 16], strides = [1, 1, 1]} : vector<8x8x32xf32> to vector<8x8x16xf32>
    %10 = vector.broadcast %1 : vector<1x8x16xf32> to vector<8x8x16xf32>
    %11 = arith.mulf %6, %10 : vector<8x8x16xf32>
    %12 = vector.broadcast %3 : vector<1x8x16xf32> to vector<8x8x16xf32>
    %13 = arith.mulf %7, %12 : vector<8x8x16xf32>
    %14 = arith.subf %11, %13 : vector<8x8x16xf32>
    %15 = vector.broadcast %1 : vector<1x8x16xf32> to vector<8x8x16xf32>
    %16 = arith.mulf %7, %15 : vector<8x8x16xf32>
    %17 = vector.broadcast %3 : vector<1x8x16xf32> to vector<8x8x16xf32>
    %18 = arith.mulf %6, %17 : vector<8x8x16xf32>
    %19 = arith.addf %16, %18 : vector<8x8x16xf32>
    %20 = tpu.concatenate %14, %19 in 2 : vector<8x8x16xf32>, vector<8x8x16xf32> -> vector<8x8x32xf32>
    %c0_9 = arith.constant 0 : index
    %c0_10 = arith.constant 0 : index
    %c0_11 = arith.constant 0 : index
    %21 = vector.load %arg6[%c0_9, %c0_10, %c0_11] : memref<8x8x32xf32, #tpu.memory_space<vmem>>, vector<8x8x32xf32>
    tpu.vector_store %arg6[%c0_9, %c0_10, %c0_11], %20 {strides = array<i32>} : memref<8x8x32xf32, #tpu.memory_space<vmem>>, vector<8x8x32xf32>,
    %22 = vector.broadcast %1 : vector<1x8x16xf32> to vector<8x8x16xf32>
    %23 = arith.mulf %8, %22 : vector<8x8x16xf32>
    %24 = vector.broadcast %3 : vector<1x8x16xf32> to vector<8x8x16xf32>
    %25 = arith.mulf %9, %24 : vector<8x8x16xf32>
    %26 = arith.subf %23, %25 : vector<8x8x16xf32>
    %27 = vector.broadcast %1 : vector<1x8x16xf32> to vector<8x8x16xf32>
    %28 = arith.mulf %9, %27 : vector<8x8x16xf32>
    %29 = vector.broadcast %3 : vector<1x8x16xf32> to vector<8x8x16xf32>
    %30 = arith.mulf %8, %29 : vector<8x8x16xf32>
    %31 = arith.addf %28, %30 : vector<8x8x16xf32>
    %32 = tpu.concatenate %26, %31 in 2 : vector<8x8x16xf32>, vector<8x8x16xf32> -> vector<8x8x32xf32>
    %c0_12 = arith.constant 0 : index
    %c0_13 = arith.constant 0 : index
    %c0_14 = arith.constant 0 : index
    %33 = vector.load %arg7[%c0_12, %c0_13, %c0_14] : memref<8x8x32xf32, #tpu.memory_space<vmem>>, vector<8x8x32xf32>
    tpu.vector_store %arg7[%c0_12, %c0_13, %c0_14], %32 {strides = array<i32>} : memref<8x8x32xf32, #tpu.memory_space<vmem>>, vector<8x8x32xf32>,
    return
  }
  func.func @transform_0(%arg0: i32, %arg1: i32) -> (i32, i32) {
    %c0_i32 = arith.constant 0 : i32
    %c0_i32_0 = arith.constant 0 : i32
    return %arg1, %c0_i32 : i32, i32
  }
  func.func @transform_1(%arg0: i32, %arg1: i32) -> (i32, i32) {
    %c0_i32 = arith.constant 0 : i32
    %c0_i32_0 = arith.constant 0 : i32
    return %arg1, %c0_i32 : i32, i32
  }
  func.func @transform_2(%arg0: i32, %arg1: i32) -> (i32, i32, i32) {
    %c0_i32 = arith.constant 0 : i32
    %c0_i32_0 = arith.constant 0 : i32
    return %arg0, %arg1, %c0_i32 : i32, i32, i32
  }
  func.func @transform_3(%arg0: i32, %arg1: i32) -> (i32, i32, i32) {
    %c0_i32 = arith.constant 0 : i32
    %c0_i32_0 = arith.constant 0 : i32
    return %arg0, %arg1, %c0_i32 : i32, i32, i32
  }
  func.func @transform_4(%arg0: i32, %arg1: i32) -> (i32, i32, i32) {
    %c0_i32 = arith.constant 0 : i32
    %c0_i32_0 = arith.constant 0 : i32
    return %arg0, %arg1, %c0_i32 : i32, i32, i32
  }
  func.func @transform_5(%arg0: i32, %arg1: i32) -> (i32, i32, i32) {
    %c0_i32 = arith.constant 0 : i32
    %c0_i32_0 = arith.constant 0 : i32
    return %arg0, %arg1, %c0_i32 : i32, i32, i32
  }
}

</mosaic_0001>

<llo_original>
// kernel: tpu_custom_call.1
$region0: #{tpu_custom_call.1}
  #allocation0 [shape = 'u32[]', space=smem, size = 0x4, offset = 0x4, fixed_abs, tag = 'smem constant byte address 0x4 - core index']
  #allocation1 [shape = 'u32[144,128]{1,0:T(1,128)}', space=vmem, size = 0x12000, scoped, tag = 'internal scratch']
  %s0 = inlined_call_operand.hbm [shape: f32[8,16], index: 0, kind: input, shape index: {}]
  %s1 = inlined_call_operand.hbm [shape: f32[8,16], index: 1, kind: input, shape index: {}]
  %s2 = inlined_call_operand.hbm [shape: f32[8,8,32], index: 2, kind: input, shape index: {}]
  %s3 = inlined_call_operand.hbm [shape: f32[8,8,32], index: 3, kind: input, shape index: {}]
  %s4 = inlined_call_operand.hbm [shape: f32[8,8,32], index: 4, kind: output, shape index: {0}]
  %s5 = inlined_call_operand.hbm [shape: f32[8,8,32], index: 5, kind: output, shape index: {1}]
  %6 = xla_tuple %s4, %s5
  %s7 = sld [smem:[#allocation0]]
  $region50: #{tpu_custom_call.1} parent=0
    _
  %s9 = ssub.s32 1, %s7
  %s10 = scalar_select 0, %s9, %s7
  $region1: #{tpu_custom_call.1} parent=0
    #allocation2 [shape = 'u8[4096]{0}', space=vmem, size = 0x1000, scoped, tag = 'input window, operand 0, single buffered']
    #allocation3 [shape = 's32[1]{0}', space=sflag, size = 0x4, scoped, tag = 'scoped memory for tpu_custom_call.1']
    #allocation4 [shape = 's32[1]{0}', space=sflag, size = 0x4, scoped, tag = 'scoped memory for tpu_custom_call.1']
    #allocation5 [shape = 'u8[4096]{0}', space=vmem, size = 0x1000, scoped, tag = 'input window, operand 1, single buffered']
    #allocation6 [shape = 's32[1]{0}', space=sflag, size = 0x4, scoped, tag = 'scoped memory for tpu_custom_call.1']
    #allocation7 [shape = 'u8[32768]{0}', space=vmem, size = 0x8000, scoped, tag = 'input window, operand 2, single buffered']
    #allocation8 [shape = 'u8[32768]{0}', space=vmem, size = 0x8000, scoped, tag = 'input window, operand 3, single buffered']
    #allocation9 [shape = 's32[1]{0}', space=sflag, size = 0x4, scoped, tag = 'scoped memory for tpu_custom_call.1']
    #allocation10 [shape = 'u8[32768]{0}', space=vmem, size = 0x8000, scoped, tag = 'output window, operand 0, single buffered']
    #allocation11 [shape = 'u8[32768]{0}', space=vmem, size = 0x8000, scoped, tag = 'output window, operand 1, single buffered']
    #allocation12 [shape = 's32[1]{0}', space=sflag, size = 0x4, scoped, tag = 'scoped memory for tpu_custom_call.1']
    %11 = vsyncpa [#allocation3], 0
    %12 = vsyncpa [#allocation6], 0
    %13 = vsyncpa [#allocation9], 0
    %14 = vsyncpa [#allocation4], 0
    %15 = vsyncpa [#allocation12], 0
    // Predicated region
    $region2: #{tpu_custom_call.1} parent=1 // pred_check
      _
    $region3: #{tpu_custom_call.1} parent=1 // pred_check_branch
      %17 = sbr.rel (0) target = $region5
    $region4: #{tpu_custom_call.1} parent=1 // pred_region
      %s19 = ssub.s32 128, 128
      %20 = vsyncadd [#allocation3], %s19
      %s22 = sshll.u32 [#allocation2], 4
      %s23 = int_to_ptr.vmem [resolvable:$true] %s22
      %25 = dma.hbm_to_vmem [thread:$0]  %s0, 128, %s23, [#allocation3]
    $region5: #{tpu_custom_call.1} parent=1 // pred_fallthru
      _
    // Predicated region
    $region6: #{tpu_custom_call.1} parent=1 // pred_check
      _
    $region7: #{tpu_custom_call.1} parent=1 // pred_check_branch
      %27 = sbr.rel (0) target = $region9
    $region8: #{tpu_custom_call.1} parent=1 // pred_region
      %s29 = ssub.s32 128, 128
      %30 = vsyncadd [#allocation6], %s29
      %s32 = sshll.u32 [#allocation5], 4
      %s33 = int_to_ptr.vmem [resolvable:$true] %s32
      %35 = dma.hbm_to_vmem [thread:$0]  %s1, 128, %s33, [#allocation6]
    $region9: #{tpu_custom_call.1} parent=1 // pred_fallthru
      _
    // Predicated region
    $region10: #{tpu_custom_call.1} parent=1 // pred_check
      _
    $region11: #{tpu_custom_call.1} parent=1 // pred_check_branch
      %37 = sbr.rel (0) target = $region13
    $region12: #{tpu_custom_call.1} parent=1 // pred_region
      %s39 = ssub.s32 1024, 1024
      %40 = vsyncadd [#allocation6], %s39
      %s41 = sshll.u32 [#allocation7], 4
      %s42 = int_to_ptr.vmem [resolvable:$true] %s41
      %47 = dma.hbm_to_vmem [thread:$0]  %s2, 1024, %s42, [#allocation6], 128, 128, 8
    $region13: #{tpu_custom_call.1} parent=1 // pred_fallthru
      _
    // Predicated region
    $region14: #{tpu_custom_call.1} parent=1 // pred_check
      _
    $region15: #{tpu_custom_call.1} parent=1 // pred_check_branch
      %49 = sbr.rel (0) target = $region17
    $region16: #{tpu_custom_call.1} parent=1 // pred_region
      %s51 = ssub.s32 1024, 1024
      %52 = vsyncadd [#allocation9], %s51
      %s53 = sshll.u32 [#allocation8], 4
      %s54 = int_to_ptr.vmem [resolvable:$true] %s53
      %59 = dma.hbm_to_vmem [thread:$0]  %s3, 1024, %s54, [#allocation9], 128, 128, 8
    $region17: #{tpu_custom_call.1} parent=1 // pred_fallthru
      _
    // Predicated region
    $region18: #{tpu_custom_call.1} parent=1 // pred_check
      _
    $region19: #{tpu_custom_call.1} parent=1 // pred_check_branch
      %61 = sbr.rel (0) target = $region21
    $region20: #{tpu_custom_call.1} parent=1 // pred_region
      %62 = dma.done [#allocation3], 128
    $region21: #{tpu_custom_call.1} parent=1 // pred_fallthru
      _
    // Predicated region
    $region22: #{tpu_custom_call.1} parent=1 // pred_check
      _
    $region23: #{tpu_custom_call.1} parent=1 // pred_check_branch
      %64 = sbr.rel (0) target = $region25
    $region24: #{tpu_custom_call.1} parent=1 // pred_region
      %65 = dma.done [#allocation6], 128
    $region25: #{tpu_custom_call.1} parent=1 // pred_fallthru
      _
    // Predicated region
    $region26: #{tpu_custom_call.1} parent=1 // pred_check
      _
    $region27: #{tpu_custom_call.1} parent=1 // pred_check_branch
      %67 = sbr.rel (0) target = $region29
    $region28: #{tpu_custom_call.1} parent=1 // pred_region
      %68 = dma.done [#allocation6], 1024
    $region29: #{tpu_custom_call.1} parent=1 // pred_fallthru
      _
    // Predicated region
    $region30: #{tpu_custom_call.1} parent=1 // pred_check
      _
    $region31: #{tpu_custom_call.1} parent=1 // pred_check_branch
      %70 = sbr.rel (0) target = $region33
    $region32: #{tpu_custom_call.1} parent=1 // pred_region
      %71 = dma.done [#allocation9], 1024
    $region33: #{tpu_custom_call.1} parent=1 // pred_fallthru
      _
    %v72 = vld [vmem:[#allocation2] sm:$0xff]
    %v73 = vld [vmem:[#allocation5] sm:$0xff]
    %v74 = vld [vmem:[#allocation7] sm:$0xff]
    %v75 = vld [vmem:[#allocation7 + $0x8] sm:$0xff]
    %v76 = vld [vmem:[#allocation7 + $0x10] sm:$0xff]
    %v77 = vld [vmem:[#allocation7 + $0x18] sm:$0xff]
    %v78 = vld [vmem:[#allocation7 + $0x20] sm:$0xff]
    %v79 = vld [vmem:[#allocation7 + $0x28] sm:$0xff]
    %v80 = vld [vmem:[#allocation7 + $0x30] sm:$0xff]
    %v81 = vld [vmem:[#allocation7 + $0x38] sm:$0xff]
    %v82 = vld [vmem:[#allocation8] sm:$0xff]
    %v83 = vld [vmem:[#allocation8 + $0x8] sm:$0xff]
    %v84 = vld [vmem:[#allocation8 + $0x10] sm:$0xff]
    %v85 = vld [vmem:[#allocation8 + $0x18] sm:$0xff]
    %v86 = vld [vmem:[#allocation8 + $0x20] sm:$0xff]
    %v87 = vld [vmem:[#allocation8 + $0x28] sm:$0xff]
    %v88 = vld [vmem:[#allocation8 + $0x30] sm:$0xff]
    %v89 = vld [vmem:[#allocation8 + $0x38] sm:$0xff]
    %v90 = vmul.f32 %v74, %v72
    %v91 = vmul.f32 %v75, %v72
    %v92 = vmul.f32 %v76, %v72
    %v93 = vmul.f32 %v77, %v72
    %v94 = vmul.f32 %v78, %v72
    %v95 = vmul.f32 %v79, %v72
    %v96 = vmul.f32 %v80, %v72
    %v97 = vmul.f32 %v81, %v72
    %99 = vrot.lane.b32.xlu0 %v73, 16
    %v100 = vpop.permute.xlu0 %99
    %v102 = vmul.f32 %v74, %v100
    %v103 = vmul.f32 %v75, %v100
    %v104 = vmul.f32 %v76, %v100
    %v105 = vmul.f32 %v77, %v100
    %v106 = vmul.f32 %v78, %v100
    %v107 = vmul.f32 %v79, %v100
    %v108 = vmul.f32 %v80, %v100
    %v109 = vmul.f32 %v81, %v100
    %118 = vrot.lane.b32.xlu0 %v102, 112
    %v119 = vpop.permute.xlu0 %118
    %120 = vrot.lane.b32.xlu0 %v103, 112
    %v121 = vpop.permute.xlu0 %120
    %122 = vrot.lane.b32.xlu0 %v104, 112
    %v123 = vpop.permute.xlu0 %122
    %124 = vrot.lane.b32.xlu0 %v105, 112
    %v125 = vpop.permute.xlu0 %124
    %126 = vrot.lane.b32.xlu0 %v106, 112
    %v127 = vpop.permute.xlu0 %126
    %128 = vrot.lane.b32.xlu0 %v107, 112
    %v129 = vpop.permute.xlu0 %128
    %130 = vrot.lane.b32.xlu0 %v108, 112
    %v131 = vpop.permute.xlu0 %130
    %132 = vrot.lane.b32.xlu0 %v109, 112
    %v133 = vpop.permute.xlu0 %132
    %v142 = vsub.f32 %v90, %v119
    %v143 = vsub.f32 %v91, %v121
    %v144 = vsub.f32 %v92, %v123
    %v145 = vsub.f32 %v93, %v125
    %v146 = vsub.f32 %v94, %v127
    %v147 = vsub.f32 %v95, %v129
    %v148 = vsub.f32 %v96, %v131
    %v149 = vsub.f32 %v97, %v133
    %151 = vrot.lane.b32.xlu0 %v72, 16
    %v152 = vpop.permute.xlu0 %151
    %v154 = vmul.f32 %v74, %v152
    %v155 = vmul.f32 %v75, %v152
    %v156 = vmul.f32 %v76, %v152
    %v157 = vmul.f32 %v77, %v152
    %v158 = vmul.f32 %v78, %v152
    %v159 = vmul.f32 %v79, %v152
    %v160 = vmul.f32 %v80, %v152
    %v161 = vmul.f32 %v81, %v152
    %v162 = vmul.f32 %v74, %v73
    %v163 = vmul.f32 %v75, %v73
    %v164 = vmul.f32 %v76, %v73
    %v165 = vmul.f32 %v77, %v73
    %v166 = vmul.f32 %v78, %v73
    %v167 = vmul.f32 %v79, %v73
    %v168 = vmul.f32 %v80, %v73
    %v169 = vmul.f32 %v81, %v73
    %178 = vrot.lane.b32.xlu0 %v162, 16
    %v179 = vpop.permute.xlu0 %178
    %180 = vrot.lane.b32.xlu0 %v163, 16
    %v181 = vpop.permute.xlu0 %180
    %182 = vrot.lane.b32.xlu0 %v164, 16
    %v183 = vpop.permute.xlu0 %182
    %184 = vrot.lane.b32.xlu0 %v165, 16
    %v185 = vpop.permute.xlu0 %184
    %186 = vrot.lane.b32.xlu0 %v166, 16
    %v187 = vpop.permute.xlu0 %186
    %188 = vrot.lane.b32.xlu0 %v167, 16
    %v189 = vpop.permute.xlu0 %188
    %190 = vrot.lane.b32.xlu0 %v168, 16
    %v191 = vpop.permute.xlu0 %190
    %192 = vrot.lane.b32.xlu0 %v169, 16
    %v193 = vpop.permute.xlu0 %192
    %v202 = vadd.f32 %v154, %v179
    %v203 = vadd.f32 %v155, %v181
    %v204 = vadd.f32 %v156, %v183
    %v205 = vadd.f32 %v157, %v185
    %v206 = vadd.f32 %v158, %v187
    %v207 = vadd.f32 %v159, %v189
    %v208 = vadd.f32 %v160, %v191
    %v209 = vadd.f32 %v161, %v193
    %vm210 = vcmask 130048
    %v211 = vsel %vm210, %v142, %v202
    %v212 = vsel %vm210, %v143, %v203
    %v213 = vsel %vm210, %v144, %v204
    %v214 = vsel %vm210, %v145, %v205
    %v215 = vsel %vm210, %v146, %v206
    %v216 = vsel %vm210, %v147, %v207
    %v217 = vsel %vm210, %v148, %v208
    %v218 = vsel %vm210, %v149, %v209
    %vm219 = vcmask 261120
    %220 = vst.msk [vmem:[#allocation10] sm:$0xff] %vm219, %v211
    %221 = vst.msk [vmem:[#allocation10 + $0x8] sm:$0xff] %vm219, %v212
    %222 = vst.msk [vmem:[#allocation10 + $0x10] sm:$0xff] %vm219, %v213
    %223 = vst.msk [vmem:[#allocation10 + $0x18] sm:$0xff] %vm219, %v214
    %224 = vst.msk [vmem:[#allocation10 + $0x20] sm:$0xff] %vm219, %v215
    %225 = vst.msk [vmem:[#allocation10 + $0x28] sm:$0xff] %vm219, %v216
    %226 = vst.msk [vmem:[#allocation10 + $0x30] sm:$0xff] %vm219, %v217
    %227 = vst.msk [vmem:[#allocation10 + $0x38] sm:$0xff] %vm219, %v218
    %v228 = vmul.f32 %v82, %v72
    %v229 = vmul.f32 %v83, %v72
    %v230 = vmul.f32 %v84, %v72
    %v231 = vmul.f32 %v85, %v72
    %v232 = vmul.f32 %v86, %v72
    %v233 = vmul.f32 %v87, %v72
    %v234 = vmul.f32 %v88, %v72
    %v235 = vmul.f32 %v89, %v72
    %v236 = vmul.f32 %v82, %v100
    %v237 = vmul.f32 %v83, %v100
    %v238 = vmul.f32 %v84, %v100
    %v239 = vmul.f32 %v85, %v100
    %v240 = vmul.f32 %v86, %v100
    %v241 = vmul.f32 %v87, %v100
    %v242 = vmul.f32 %v88, %v100
    %v243 = vmul.f32 %v89, %v100
    %252 = vrot.lane.b32.xlu0 %v236, 112
    %v253 = vpop.permute.xlu0 %252
    %254 = vrot.lane.b32.xlu0 %v237, 112
    %v255 = vpop.permute.xlu0 %254
    %256 = vrot.lane.b32.xlu0 %v238, 112
    %v257 = vpop.permute.xlu0 %256
    %258 = vrot.lane.b32.xlu0 %v239, 112
    %v259 = vpop.permute.xlu0 %258
    %260 = vrot.lane.b32.xlu0 %v240, 112
    %v261 = vpop.permute.xlu0 %260
    %262 = vrot.lane.b32.xlu0 %v241, 112
    %v263 = vpop.permute.xlu0 %262
    %264 = vrot.lane.b32.xlu0 %v242, 112
    %v265 = vpop.permute.xlu0 %264
    %266 = vrot.lane.b32.xlu0 %v243, 112
    %v267 = vpop.permute.xlu0 %266
    %v276 = vsub.f32 %v228, %v253
    %v277 = vsub.f32 %v229, %v255
    %v278 = vsub.f32 %v230, %v257
    %v279 = vsub.f32 %v231, %v259
    %v280 = vsub.f32 %v232, %v261
    %v281 = vsub.f32 %v233, %v263
    %v282 = vsub.f32 %v234, %v265
    %v283 = vsub.f32 %v235, %v267
    %v284 = vmul.f32 %v82, %v152
    %v285 = vmul.f32 %v83, %v152
    %v286 = vmul.f32 %v84, %v152
    %v287 = vmul.f32 %v85, %v152
    %v288 = vmul.f32 %v86, %v152
    %v289 = vmul.f32 %v87, %v152
    %v290 = vmul.f32 %v88, %v152
    %v291 = vmul.f32 %v89, %v152
    %v292 = vmul.f32 %v82, %v73
    %v293 = vmul.f32 %v83, %v73
    %v294 = vmul.f32 %v84, %v73
    %v295 = vmul.f32 %v85, %v73
    %v296 = vmul.f32 %v86, %v73
    %v297 = vmul.f32 %v87, %v73
    %v298 = vmul.f32 %v88, %v73
    %v299 = vmul.f32 %v89, %v73
    %308 = vrot.lane.b32.xlu0 %v292, 16
    %v309 = vpop.permute.xlu0 %308
    %310 = vrot.lane.b32.xlu0 %v293, 16
    %v311 = vpop.permute.xlu0 %310
    %312 = vrot.lane.b32.xlu0 %v294, 16
    %v313 = vpop.permute.xlu0 %312
    %314 = vrot.lane.b32.xlu0 %v295, 16
    %v315 = vpop.permute.xlu0 %314
    %316 = vrot.lane.b32.xlu0 %v296, 16
    %v317 = vpop.permute.xlu0 %316
    %318 = vrot.lane.b32.xlu0 %v297, 16
    %v319 = vpop.permute.xlu0 %318
    %320 = vrot.lane.b32.xlu0 %v298, 16
    %v321 = vpop.permute.xlu0 %320
    %322 = vrot.lane.b32.xlu0 %v299, 16
    %v323 = vpop.permute.xlu0 %322
    %v332 = vadd.f32 %v284, %v309
    %v333 = vadd.f32 %v285, %v311
    %v334 = vadd.f32 %v286, %v313
    %v335 = vadd.f32 %v287, %v315
    %v336 = vadd.f32 %v288, %v317
    %v337 = vadd.f32 %v289, %v319
    %v338 = vadd.f32 %v290, %v321
    %v339 = vadd.f32 %v291, %v323
    %v340 = vsel %vm210, %v276, %v332
    %v341 = vsel %vm210, %v277, %v333
    %v342 = vsel %vm210, %v278, %v334
    %v343 = vsel %vm210, %v279, %v335
    %v344 = vsel %vm210, %v280, %v336
    %v345 = vsel %vm210, %v281, %v337
    %v346 = vsel %vm210, %v282, %v338
    %v347 = vsel %vm210, %v283, %v339
    %348 = vst.msk [vmem:[#allocation11] sm:$0xff] %vm219, %v340
    %349 = vst.msk [vmem:[#allocation11 + $0x8] sm:$0xff] %vm219, %v341
    %350 = vst.msk [vmem:[#allocation11 + $0x10] sm:$0xff] %vm219, %v342
    %351 = vst.msk [vmem:[#allocation11 + $0x18] sm:$0xff] %vm219, %v343
    %352 = vst.msk [vmem:[#allocation11 + $0x20] sm:$0xff] %vm219, %v344
    %353 = vst.msk [vmem:[#allocation11 + $0x28] sm:$0xff] %vm219, %v345
    %354 = vst.msk [vmem:[#allocation11 + $0x30] sm:$0xff] %vm219, %v346
    %355 = vst.msk [vmem:[#allocation11 + $0x38] sm:$0xff] %vm219, %v347
    // Predicated region
    $region34: #{tpu_custom_call.1} parent=1 // pred_check
      _
    $region35: #{tpu_custom_call.1} parent=1 // pred_check_branch
      %357 = sbr.rel (0) target = $region37
    $region36: #{tpu_custom_call.1} parent=1 // pred_region
      %s359 = ssub.s32 1024, 1024
      %360 = vsyncadd [#allocation4], %s359
      %s361 = sshll.u32 [#allocation10], 4
      %s362 = int_to_ptr.vmem [resolvable:$true] %s361
      %367 = dma.vmem_to_hbm [thread:$0]  %s362, 1024, %s4, [#allocation4], 128, 128, 8
    $region37: #{tpu_custom_call.1} parent=1 // pred_fallthru
      _
    // Predicated region
    $region38: #{tpu_custom_call.1} parent=1 // pred_check
      _
    $region39: #{tpu_custom_call.1} parent=1 // pred_check_branch
      %369 = sbr.rel (0) target = $region41
    $region40: #{tpu_custom_call.1} parent=1 // pred_region
      %s371 = ssub.s32 1024, 1024
      %372 = vsyncadd [#allocation12], %s371
      %s373 = sshll.u32 [#allocation11], 4
      %s374 = int_to_ptr.vmem [resolvable:$true] %s373
      %379 = dma.vmem_to_hbm [thread:$0]  %s374, 1024, %s5, [#allocation12], 128, 128, 8
    $region41: #{tpu_custom_call.1} parent=1 // pred_fallthru
      _
    // Predicated region
    $region42: #{tpu_custom_call.1} parent=1 // pred_check
      _
    $region43: #{tpu_custom_call.1} parent=1 // pred_check_branch
      %381 = sbr.rel (0) target = $region45
    $region44: #{tpu_custom_call.1} parent=1 // pred_region
      %382 = dma.done [#allocation4], 1024
    $region45: #{tpu_custom_call.1} parent=1 // pred_fallthru
      _
    // Predicated region
    $region46: #{tpu_custom_call.1} parent=1 // pred_check
      _
    $region47: #{tpu_custom_call.1} parent=1 // pred_check_branch
      %384 = sbr.rel (0) target = $region49
    $region48: #{tpu_custom_call.1} parent=1 // pred_region
      %385 = dma.done [#allocation12], 1024
    $region49: #{tpu_custom_call.1} parent=1 // pred_fallthru
      _
    %386 = vsyncpa [#allocation3], 1
    %387 = vsyncpa [#allocation6], 1
    %388 = vsyncpa [#allocation9], 1
    %389 = vsyncpa [#allocation4], 1
    %390 = vsyncpa [#allocation12], 1

</llo_original>
